<compile_context>
chip_gen: v7x
topology: tpu7x:2x2x1
jax: 0.10.0
libtpu: 0.0.40
codegen_flags: <defaults>
</compile_context>

<pallas_src>
import functools

import jax
import jax.numpy as jnp
from jax.experimental import pallas as pl
from jax.experimental.pallas import tpu as pltpu


LANE = 128        # vreg lane width
SUBLANE = 8       # f32 vreg sublanes
NEG_INF = -1e30   # mask value for padded logit lanes (kept in f32 biases)


def _round_up(x, m):
    return ((x + m - 1) // m) * m


def _cdiv(a, b):
    return -(-a // b)


def policy_net_kernel(x_ref, w1_ref, b1_ref, w2_ref, b2_ref, o_ref):
    """One batch tile: (x @ W1 + b1) -> ReLU -> (@ W2 + b2) -> softmax.

    Matmuls / softmax run on lane-dense (128-wide) padded tiles; only the
    D_out real logit lanes are written to the output ref.
    """
    x = x_ref[...]                                                      # [TB, D_in]
    h = jnp.dot(x, w1_ref[...], preferred_element_type=jnp.float32)    # [TB, H_p] f32
    h = jnp.maximum(h + b1_ref[...], 0.0)                              # ReLU (f32)
    if h.dtype != w2_ref.dtype:                                        # only cast if bf16 requested
        h = h.astype(w2_ref.dtype)
    logits = jnp.dot(h, w2_ref[...], preferred_element_type=jnp.float32)
    logits = logits + b2_ref[...]                                      # padded lanes ~= -1e30
    # numerically-stable softmax over the lane-dense last axis
    m = jnp.max(logits, axis=-1, keepdims=True)
    e = jnp.exp(logits - m)                                            # padded lanes -> 0
    s = jnp.sum(e, axis=-1, keepdims=True)
    probs = e / s                                                      # exact: rows sum to 1
    d_out = o_ref.shape[-1]                                            # static
    o_ref[...] = probs[:, :d_out].astype(o_ref.dtype)                  # store only real lanes


def policy_network_forward(state, w1, b1, w2, b2, *, block_batch=512,
                           single_block_rows=4096,
                           compute_dtype=jnp.float32):
    B, D_in = state.shape
    H = w1.shape[1]
    D_out = w2.shape[1]

    # Lane-dense padding of hidden and logit dims for MXU/VPU work.
    H_p = _round_up(H, LANE)
    O_p = _round_up(D_out, LANE)

    w1p = jnp.pad(w1, ((0, 0), (0, H_p - H))).astype(compute_dtype)
    b1p = jnp.pad(b1.reshape(1, -1), ((0, 0), (0, H_p - H))).astype(jnp.float32)
    w2p = jnp.pad(w2, ((0, H_p - H), (0, O_p - D_out))).astype(compute_dtype)
    b2p = jnp.pad(b2.reshape(1, -1), ((0, 0), (0, O_p - D_out))).astype(jnp.float32)
    # Mask padded logit lanes with a huge negative bias so softmax ignores them.
    lane_mask = (jnp.arange(O_p) < D_out)[None, :]
    b2p = jnp.where(lane_mask, b2p, NEG_INF)

    x = state.astype(compute_dtype)
    out_dtype = jnp.float32

    B_min = _round_up(B, SUBLANE)
    if B_min <= single_block_rows:
        # ---- no-grid single-block path: zero pipeline / per-step overhead ----
        B_p = B_min
        if B_p != B:
            x = jnp.pad(x, ((0, B_p - B), (0, 0)))
        vmem = pl.BlockSpec(memory_space=pltpu.MemorySpace.VMEM)
        out = pl.pallas_call(
            policy_net_kernel,
            out_shape=jax.ShapeDtypeStruct((B_p, D_out), out_dtype),
            in_specs=[vmem, vmem, vmem, vmem, vmem],
            out_specs=vmem,
        )(x, w1p, b1p, w2p, b2p)
    else:
        # ---- batch-tiled grid path for very large rollout batches ----
        n_tiles = _cdiv(B, block_batch)
        if n_tiles % 2 == 1:
            n_tiles += 1                      # even tile count -> balanced across v7x's 2 TCs
        tb = _round_up(_cdiv(B, n_tiles), SUBLANE)   # tile derived from B: minimal row padding
        B_p = tb * n_tiles
        if B_p != B:
            x = jnp.pad(x, ((0, B_p - B), (0, 0)))
        out = pl.pallas_call(
            policy_net_kernel,
            out_shape=jax.ShapeDtypeStruct((B_p, D_out), out_dtype),
            grid=(n_tiles,),
            in_specs=[
                pl.BlockSpec((tb, D_in), lambda i: (i, 0)),    # batch tile of x
                pl.BlockSpec((D_in, H_p), lambda i: (0, 0)),   # W1 resident
                pl.BlockSpec((1, H_p), lambda i: (0, 0)),      # b1 resident
                pl.BlockSpec((H_p, O_p), lambda i: (0, 0)),    # W2 resident
                pl.BlockSpec((1, O_p), lambda i: (0, 0)),      # b2 resident (masked lanes)
            ],
            out_specs=pl.BlockSpec((tb, D_out), lambda i: (i, 0)),
            compiler_params=pltpu.CompilerParams(
                dimension_semantics=("parallel",)),            # shard batch tiles over TCs
        )(x, w1p, b1p, w2p, b2p)

    if B_p != B:
        out = out[:B]
    return out


def init_params(key, input_dim, hidden_dim, output_dim):
    # Deterministic init mimicking nn.Linear's uniform(-1/sqrt(fan_in), 1/sqrt(fan_in)).
    k1, k2, k3, k4 = jax.random.split(key, 4)
    bound1 = 1.0 / float(input_dim) ** 0.5
    bound2 = 1.0 / float(hidden_dim) ** 0.5
    w1 = jax.random.uniform(k1, (input_dim, hidden_dim), jnp.float32, -bound1, bound1)
    b1 = jax.random.uniform(k2, (hidden_dim,), jnp.float32, -bound1, bound1)
    w2 = jax.random.uniform(k3, (hidden_dim, output_dim), jnp.float32, -bound2, bound2)
    b2 = jax.random.uniform(k4, (output_dim,), jnp.float32, -bound2, bound2)
    return w1, b1, w2, b2


if __name__ == "__main__":
    input_dim, hidden_dim, output_dim = 16, 32, 4

    key = jax.random.PRNGKey(0)
    k_small, k_params, k_med = jax.random.split(key, 3)
    w1, b1, w2, b2 = init_params(k_params, input_dim, hidden_dim, output_dim)

    def reference(x):
        h = jnp.maximum(x @ w1 + b1, 0.0)
        return jax.nn.softmax(h @ w2 + b2, axis=-1)

    forward = jax.jit(policy_network_forward)
    # Force the batch-tiled grid path at small shapes (normally only hit for B > 4096).
    forward_grid = jax.jit(functools.partial(
        policy_network_forward, block_batch=128, single_block_rows=128))

    # 1) tiny RL-sized batch: single VMEM block, no-grid path.
    state_small = jax.random.normal(k_small, (8, input_dim), jnp.float32)
    out_small = jax.block_until_ready(forward(state_small, w1, b1, w2, b2))
    ref_small = reference(state_small)
    assert out_small.shape == (8, output_dim)
    assert jnp.allclose(out_small, ref_small, atol=1e-4, rtol=1e-4)
    assert jnp.allclose(jnp.sum(out_small, axis=-1), 1.0, atol=1e-5)

    # 2) realistic rollout batch (B=300): still the single-block path (minimal
    #    8-row padding, no grid overhead).
    state_med = jax.random.normal(k_med, (300, input_dim), jnp.float32)
    out_med = jax.block_until_ready(forward(state_med, w1, b1, w2, b2))
    ref_med = reference(state_med)
    assert out_med.shape == (300, output_dim)
    assert jnp.allclose(out_med, ref_med, atol=1e-4, rtol=1e-4)
    assert jnp.allclose(jnp.sum(out_med, axis=-1), 1.0, atol=1e-5)

    # 3) grid path (even tile count, batch-derived tile size): B=300 -> 4 tiles of 80 rows.
    out_grid = jax.block_until_ready(forward_grid(state_med, w1, b1, w2, b2))
    assert out_grid.shape == (300, output_dim)
    assert jnp.allclose(out_grid, ref_med, atol=1e-4, rtol=1e-4)
    assert jnp.allclose(jnp.sum(out_grid, axis=-1), 1.0, atol=1e-5)

    print("KERNEL_OK")
</pallas_src>

<mosaic_0001>
module attributes {stable_mosaic.version = 11 : i64} {
  func.func @policy_net_kernel(%arg0: memref<8x16xf32, #tpu.memory_space<vmem>>, %arg1: memref<16x128xf32, #tpu.memory_space<vmem>>, %arg2: memref<1x128xf32, #tpu.memory_space<vmem>>, %arg3: memref<128x128xf32, #tpu.memory_space<vmem>>, %arg4: memref<1x128xf32, #tpu.memory_space<vmem>>, %arg5: memref<8x4xf32, #tpu.memory_space<vmem>>) attributes {dimension_semantics = [], scalar_prefetch = 0 : i64, scratch_operands = 0 : i64, tpu.core_type = #tpu.core_type<tc>} {
    %c0 = arith.constant 0 : index
    %c0_0 = arith.constant 0 : index
    %0 = vector.load %arg0[%c0, %c0_0] : memref<8x16xf32, #tpu.memory_space<vmem>>, vector<8x16xf32>
    %c0_1 = arith.constant 0 : index
    %c0_2 = arith.constant 0 : index
    %1 = vector.load %arg1[%c0_1, %c0_2] : memref<16x128xf32, #tpu.memory_space<vmem>>, vector<16x128xf32>
    %cst = arith.constant dense<0.000000e+00> : vector<8x128xf32>
    %2 = tpu.matmul %0, %1, %cst {dimension_numbers = #tpu.dot_dimension_numbers<[1], [0], [0], [1], [0, 0, 1, 1], [], []>} : vector<8x16xf32>, vector<16x128xf32>, vector<8x128xf32> -> vector<8x128xf32>
    %c0_3 = arith.constant 0 : index
    %c0_4 = arith.constant 0 : index
    %3 = vector.load %arg2[%c0_3, %c0_4] : memref<1x128xf32, #tpu.memory_space<vmem>>, vector<1x128xf32>
    %4 = vector.broadcast %3 : vector<1x128xf32> to vector<8x128xf32>
    %5 = arith.addf %2, %4 : vector<8x128xf32>
    %cst_5 = arith.constant 0.000000e+00 : f32
    %6 = vector.broadcast %cst_5 : f32 to vector<8x128xf32>
    %7 = arith.maximumf %5, %6 : vector<8x128xf32>
    %c0_6 = arith.constant 0 : index
    %c0_7 = arith.constant 0 : index
    %8 = vector.load %arg3[%c0_6, %c0_7] : memref<128x128xf32, #tpu.memory_space<vmem>>, vector<128x128xf32>
    %cst_8 = arith.constant dense<0.000000e+00> : vector<8x128xf32>
    %9 = tpu.matmul %7, %8, %cst_8 {dimension_numbers = #tpu.dot_dimension_numbers<[1], [0], [0], [1], [0, 0, 1, 1], [], []>} : vector<8x128xf32>, vector<128x128xf32>, vector<8x128xf32> -> vector<8x128xf32>
    %c0_9 = arith.constant 0 : index
    %c0_10 = arith.constant 0 : index
    %10 = vector.load %arg4[%c0_9, %c0_10] : memref<1x128xf32, #tpu.memory_space<vmem>>, vector<1x128xf32>
    %11 = vector.broadcast %10 : vector<1x128xf32> to vector<8x128xf32>
    %12 = arith.addf %9, %11 : vector<8x128xf32>
    %cst_11 = arith.constant dense<0xFF800000> : vector<8xf32>
    %13 = vector.multi_reduction <maximumf>, %12, %cst_11 [1] : vector<8x128xf32> to vector<8xf32>
    %14 = vector.shape_cast %13 : vector<8xf32> to vector<8x1xf32>
    %15 = vector.broadcast %14 : vector<8x1xf32> to vector<8x128xf32>
    %16 = arith.subf %12, %15 : vector<8x128xf32>
    %17 = math.exp %16 : vector<8x128xf32>
    %cst_12 = arith.constant dense<0.000000e+00> : vector<8xf32>
    %18 = vector.multi_reduction <add>, %17, %cst_12 [1] : vector<8x128xf32> to vector<8xf32>
    %19 = vector.shape_cast %18 : vector<8xf32> to vector<8x1xf32>
    %20 = vector.broadcast %19 : vector<8x1xf32> to vector<8x128xf32>
    %21 = arith.divf %17, %20 : vector<8x128xf32>
    %22 = vector.extract_strided_slice %21 {offsets = [0, 0], sizes = [8, 4], strides = [1, 1]} : vector<8x128xf32> to vector<8x4xf32>
    %c0_13 = arith.constant 0 : index
    %c0_14 = arith.constant 0 : index
    %23 = vector.load %arg5[%c0_13, %c0_14] : memref<8x4xf32, #tpu.memory_space<vmem>>, vector<8x4xf32>
    tpu.vector_store %arg5[%c0_13, %c0_14], %22 {strides = array<i32>} : memref<8x4xf32, #tpu.memory_space<vmem>>, vector<8x4xf32>,
    return
  }
}

</mosaic_0001>

<llo_original>
// kernel: policy_network_forward.1
$region0: #{policy_network_forward.1}
  #allocation0 [shape = 'u32[]', space=smem, size = 0x4, offset = 0x4, fixed_abs, tag = 'smem constant byte address 0x4 - core index']
  #allocation1 [shape = 'u32[144,128]{1,0:T(1,128)}', space=vmem, size = 0x12000, scoped, tag = 'internal scratch']
  %s0 = inlined_call_operand.vmem [shape: f32[8,16], index: 0, kind: input, shape index: {}]
  %s1 = inlined_call_operand.vmem [shape: f32[16,128], index: 1, kind: input, shape index: {}]
  %s2 = inlined_call_operand.vmem [shape: f32[1,128], index: 2, kind: input, shape index: {}]
  %s3 = inlined_call_operand.vmem [shape: f32[128,128], index: 3, kind: input, shape index: {}]
  %s4 = inlined_call_operand.vmem [shape: f32[1,128], index: 4, kind: input, shape index: {}]
  %s5 = inlined_call_operand.vmem [shape: f32[8,4], index: 5, kind: output, shape index: {}]
  %s6 = sld [smem:[#allocation0]]
  $region30: #{policy_network_forward.1} parent=0
    _
  %s8 = ssub.s32 1, %s6
  %s9 = scalar_select 0, %s8, %s6
  // Predicated region
  $region2: #{policy_network_forward.1} parent=0 // pred_check
    _
  $region3: #{policy_network_forward.1} parent=0 // pred_check_branch
    %11 = sbr.rel (0) target = $region5
  $region4: #{policy_network_forward.1} parent=0 // pred_region
    _
  $region5: #{policy_network_forward.1} parent=0 // pred_fallthru
    _
  // Predicated region
  $region6: #{policy_network_forward.1} parent=0 // pred_check
    _
  $region7: #{policy_network_forward.1} parent=0 // pred_check_branch
    %13 = sbr.rel (0) target = $region9
  $region8: #{policy_network_forward.1} parent=0 // pred_region
    _
  $region9: #{policy_network_forward.1} parent=0 // pred_fallthru
    _
  // Predicated region
  $region10: #{policy_network_forward.1} parent=0 // pred_check
    _
  $region11: #{policy_network_forward.1} parent=0 // pred_check_branch
    %15 = sbr.rel (0) target = $region13
  $region12: #{policy_network_forward.1} parent=0 // pred_region
    _
  $region13: #{policy_network_forward.1} parent=0 // pred_fallthru
    _
  // Predicated region
  $region14: #{policy_network_forward.1} parent=0 // pred_check
    _
  $region15: #{policy_network_forward.1} parent=0 // pred_check_branch
    %17 = sbr.rel (0) target = $region17
  $region16: #{policy_network_forward.1} parent=0 // pred_region
    _
  $region17: #{policy_network_forward.1} parent=0 // pred_fallthru
    _
  // Predicated region
  $region18: #{policy_network_forward.1} parent=0 // pred_check
    _
  $region19: #{policy_network_forward.1} parent=0 // pred_check_branch
    %19 = sbr.rel (0) target = $region21
  $region20: #{policy_network_forward.1} parent=0 // pred_region
    _
  $region21: #{policy_network_forward.1} parent=0 // pred_fallthru
    _
  %v20 = vld [vmem:[%s0] sm:$0xff]
  %v21 = vld [vmem:[%s1] sm:$0xff]
  %v22 = vld [vmem:[%s1 + $0x8] sm:$0xff]
  %v23 = vld [vmem:[%s2] sm:$0x1]
  %v25 = vlaneseq
  %v26 = vshrl.u32 %v25, 7
  %v27 = vsub.s32 0, %v26
  %v28 = vrot.slane %v23, %v27
  %vm30 = vcmask 130048
  %v32 = vsel %vm30, %v20, 0
  %34 = vmatprep.subr.mxu0 0.0
  %35 = vmatpush1.msra.mxu0 %v21
  %36 = vmatprep.subr.mxu0 0.0
  %37 = vmatpush1.msra.mxu0 %v22
  %38 = vmatprep.subr.mxu0 0.0
  %39 = vmatpush1.msra.mxu0 0.0
  %40 = vmatprep.subr.mxu0 0.0
  %41 = vmatpush1.msra.mxu0 0.0
  %42 = vmatprep.subr.mxu0 0.0
  %43 = vmatpush1.msra.mxu0 0.0
  %44 = vmatprep.subr.mxu0 0.0
  %45 = vmatpush1.msra.mxu0 0.0
  %46 = vmatprep.subr.mxu0 0.0
  %47 = vmatpush1.msra.mxu0 0.0
  %48 = vmatprep.subr.mxu0 0.0
  %49 = vmatpush1.msra.mxu0 0.0
  %50 = vmatprep.subr.mxu0 0.0
  %51 = vmatpush1.msra.mxu0 0.0
  %52 = vmatprep.subr.mxu0 0.0
  %53 = vmatpush1.msra.mxu0 0.0
  %54 = vmatprep.subr.mxu0 0.0
  %55 = vmatpush1.msra.mxu0 0.0
  %56 = vmatprep.subr.mxu0 0.0
  %57 = vmatpush1.msra.mxu0 0.0
  %58 = vmatprep.subr.mxu0 0.0
  %59 = vmatpush1.msra.mxu0 0.0
  %60 = vmatprep.subr.mxu0 0.0
  %61 = vmatpush1.msra.mxu0 0.0
  %62 = vmatprep.subr.mxu0 0.0
  %63 = vmatpush1.msra.mxu0 0.0
  %64 = vmatprep.subr.mxu0 0.0
  %65 = vmatpush1.msra.mxu0 0.0
  %66 = vmatprep.subr.mxu0 0.0
  %67 = vmatpush1.msra.mxu0 0.0
  %68 = vmatprep.subr.mxu0 0.0
  %69 = vmatpush1.msra.mxu0 0.0
  %70 = vmatprep.subr.mxu0 0.0
  %71 = vmatpush1.msra.mxu0 0.0
  %72 = vmatprep.subr.mxu0 0.0
  %73 = vmatpush1.msra.mxu0 0.0
  %74 = vmatprep.subr.mxu0 0.0
  %75 = vmatpush1.msra.mxu0 0.0
  %76 = vmatprep.subr.mxu0 0.0
  %77 = vmatpush1.msra.mxu0 0.0
  %78 = vmatprep.subr.mxu0 0.0
  %79 = vmatpush1.msra.mxu0 0.0
  %80 = vmatprep.subr.mxu0 0.0
  %81 = vmatpush1.msra.mxu0 0.0
  %82 = vmatprep.subr.mxu0 0.0
  %83 = vmatpush1.msra.mxu0 0.0
  %84 = vmatprep.subr.mxu0 0.0
  %85 = vmatpush1.msra.mxu0 0.0
  %86 = vmatprep.subr.mxu0 0.0
  %87 = vmatpush1.msra.mxu0 0.0
  %88 = vmatprep.subr.mxu0 0.0
  %89 = vmatpush1.msra.mxu0 0.0
  %90 = vmatprep.subr.mxu0 0.0
  %91 = vmatpush1.msra.mxu0 0.0
  %92 = vmatprep.subr.mxu0 0.0
  %93 = vmatpush1.msra.mxu0 0.0
  %94 = vmatprep.subr.mxu0 0.0
  %95 = vmatpush1.msra.mxu0 0.0
  %96 = vmatprep.subr.mxu0 0.0
  %97 = vmatpush1.msra.mxu0 0.0
  %98 = vmatprep.mubr.f32.mxu0 0.0
  %99 = vmatmul.mubr.f32.gmra.mrb[0].mxu0 %v32
  %v100 = vpop.f32.mrb[0].mxu0
  %v101 = vadd.f32 %v28, %v100
  %v102 = vpop.f32.mrb[0].mxu0
  %103 = vdwg.mxu0
  %v104 = vmax.f32 %v101, 0.0
  %v105 = vld [vmem:[%s3] sm:$0xff]
  %v106 = vld [vmem:[%s3 + $0x8] sm:$0xff]
  %v107 = vld [vmem:[%s3 + $0x10] sm:$0xff]
  %v108 = vld [vmem:[%s3 + $0x18] sm:$0xff]
  %v109 = vld [vmem:[%s3 + $0x20] sm:$0xff]
  %v110 = vld [vmem:[%s3 + $0x28] sm:$0xff]
  %v111 = vld [vmem:[%s3 + $0x30] sm:$0xff]
  %v112 = vld [vmem:[%s3 + $0x38] sm:$0xff]
  %v113 = vld [vmem:[%s3 + $0x40] sm:$0xff]
  %v114 = vld [vmem:[%s3 + $0x48] sm:$0xff]
  %v115 = vld [vmem:[%s3 + $0x50] sm:$0xff]
  %v116 = vld [vmem:[%s3 + $0x58] sm:$0xff]
  %v117 = vld [vmem:[%s3 + $0x60] sm:$0xff]
  %v118 = vld [vmem:[%s3 + $0x68] sm:$0xff]
  %v119 = vld [vmem:[%s3 + $0x70] sm:$0xff]
  %v120 = vld [vmem:[%s3 + $0x78] sm:$0xff]
  %v121 = vld [vmem:[%s4] sm:$0x1]
  %v123 = vlaneseq
  %v124 = vshrl.u32 %v123, 7
  %v125 = vsub.s32 0, %v124
  %v126 = vrot.slane %v121, %v125
  %128 = vmatprep.subr.mxu0 0.0
  %129 = vmatpush1.msra.mxu0 %v105
  %130 = vmatprep.subr.mxu0 0.0
  %131 = vmatpush1.msra.mxu0 %v106
  %132 = vmatprep.subr.mxu0 0.0
  %133 = vmatpush1.msra.mxu0 %v107
  %134 = vmatprep.subr.mxu0 0.0
  %135 = vmatpush1.msra.mxu0 %v108
  %136 = vmatprep.subr.mxu0 0.0
  %137 = vmatpush1.msra.mxu0 %v109
  %138 = vmatprep.subr.mxu0 0.0
  %139 = vmatpush1.msra.mxu0 %v110
  %140 = vmatprep.subr.mxu0 0.0
  %141 = vmatpush1.msra.mxu0 %v111
  %142 = vmatprep.subr.mxu0 0.0
  %143 = vmatpush1.msra.mxu0 %v112
  %144 = vmatprep.subr.mxu0 0.0
  %145 = vmatpush1.msra.mxu0 %v113
  %146 = vmatprep.subr.mxu0 0.0
  %147 = vmatpush1.msra.mxu0 %v114
  %148 = vmatprep.subr.mxu0 0.0
  %149 = vmatpush1.msra.mxu0 %v115
  %150 = vmatprep.subr.mxu0 0.0
  %151 = vmatpush1.msra.mxu0 %v116
  %152 = vmatprep.subr.mxu0 0.0
  %153 = vmatpush1.msra.mxu0 %v117
  %154 = vmatprep.subr.mxu0 0.0
  %155 = vmatpush1.msra.mxu0 %v118
  %156 = vmatprep.subr.mxu0 0.0
  %157 = vmatpush1.msra.mxu0 %v119
  %158 = vmatprep.subr.mxu0 0.0
  %159 = vmatpush1.msra.mxu0 %v120
  %160 = vmatprep.subr.mxu0 0.0
  %161 = vmatpush1.msra.mxu0 0.0
  %162 = vmatprep.subr.mxu0 0.0
  %163 = vmatpush1.msra.mxu0 0.0
  %164 = vmatprep.subr.mxu0 0.0
  %165 = vmatpush1.msra.mxu0 0.0
  %166 = vmatprep.subr.mxu0 0.0
  %167 = vmatpush1.msra.mxu0 0.0
  %168 = vmatprep.subr.mxu0 0.0
  %169 = vmatpush1.msra.mxu0 0.0
  %170 = vmatprep.subr.mxu0 0.0
  %171 = vmatpush1.msra.mxu0 0.0
  %172 = vmatprep.subr.mxu0 0.0
  %173 = vmatpush1.msra.mxu0 0.0
  %174 = vmatprep.subr.mxu0 0.0
  %175 = vmatpush1.msra.mxu0 0.0
  %176 = vmatprep.subr.mxu0 0.0
  %177 = vmatpush1.msra.mxu0 0.0
  %178 = vmatprep.subr.mxu0 0.0
  %179 = vmatpush1.msra.mxu0 0.0
  %180 = vmatprep.subr.mxu0 0.0
  %181 = vmatpush1.msra.mxu0 0.0
  %182 = vmatprep.subr.mxu0 0.0
  %183 = vmatpush1.msra.mxu0 0.0
  %184 = vmatprep.subr.mxu0 0.0
  %185 = vmatpush1.msra.mxu0 0.0
  %186 = vmatprep.subr.mxu0 0.0
  %187 = vmatpush1.msra.mxu0 0.0
  %188 = vmatprep.subr.mxu0 0.0
  %189 = vmatpush1.msra.mxu0 0.0
  %190 = vmatprep.subr.mxu0 0.0
  %191 = vmatpush1.msra.mxu0 0.0
  %192 = vmatprep.mubr.f32.mxu0 0.0
  %193 = vmatmul.mubr.f32.gmra.mrb[0].mxu0 %v104
  %v194 = vpop.f32.mrb[0].mxu0
  %v195 = vadd.f32 %v126, %v194
  %v196 = vpop.f32.mrb[0].mxu0
  %197 = vdwg.mxu0
  %198 = vmax.xlane.f32.xlu0 %v195
  %v199 = vpop.xlane.xlu0 %198
  %v200 = vsub.f32 %v195, %v199
  %v201 = vmul.f32 %v200, 1.442695
  %v202 = vpow.pop %v201
  %203 = vadd.xlane.f32.xlu0 %v202
  %v204 = vpop.xlane.xlu0 %203
  %v205 = vrcp.pop %v204
  %v206 = vmul.f32 %v202, %v205
  %vm207 = vcmask 31744
  %208 = vst.msk [vmem:[%s5] sm:$0xff] %vm207, %v206
  // Predicated region
  $region22: #{policy_network_forward.1} parent=0 // pred_check
    _
  $region23: #{policy_network_forward.1} parent=0 // pred_check_branch
    %210 = sbr.rel (0) target = $region25
  $region24: #{policy_network_forward.1} parent=0 // pred_region
    _
  $region25: #{policy_network_forward.1} parent=0 // pred_fallthru
    _
  // Predicated region
  $region26: #{policy_network_forward.1} parent=0 // pred_check
    _
  $region27: #{policy_network_forward.1} parent=0 // pred_check_branch
    %212 = sbr.rel (0) target = $region29
  $region28: #{policy_network_forward.1} parent=0 // pred_region
    _
  $region29: #{policy_network_forward.1} parent=0 // pred_fallthru
    _

</llo_original>
